<compile_context>
chip_gen: v5e
topology: v5e:2x2
jax: 0.10.0
libtpu: 0.0.40
codegen_flags: <defaults>
</compile_context>

<pallas_src>
import jax
import jax.numpy as jnp
import numpy as np
from jax.experimental import pallas as pl
from jax.experimental.pallas import tpu as pltpu


def _round_up(x, m):
    return ((x + m - 1) // m) * m


def _connector_kernel(x_ref, dom_ref, w_ref, b_ref, out_ref):
    """One node tile: wide MXU matmul + per-domain select + sliced stores.

    x_ref   : (TN, D_in)      f32  node input features (cast to bf16 in-kernel)
    dom_ref : (TN, 1)         i32  domain id per node; id == K means 'layer'/None
    w_ref   : (D_in, K*D_out) bf16 all domain extractor weights, concatenated
    b_ref   : (K, D_out)      f32  per-domain extractor biases
    out_ref : (TN, L)              [feats | one-hot | zero pad], L = ceil128(D_out+K)
    """
    num_types, d_out = b_ref.shape
    tn, out_lanes = out_ref.shape
    out_dtype = out_ref.dtype

    # In-kernel cast: input stays f32 in HBM (single 4 B/elem DMA), bf16 to MXU.
    x = x_ref[...].astype(jnp.bfloat16)              # (TN, D_in)
    dom = dom_ref[...]                               # (TN, 1) i32

    # One wide MXU matmul across all K domain extractors (f32 accumulation).
    y = jnp.dot(x, w_ref[...], preferred_element_type=jnp.float32)  # (TN, K*D_out)

    # One-hot type vector; all-zero row for 'layer'/None nodes (id == K).
    iota = jax.lax.broadcasted_iota(jnp.int32, (tn, num_types), 1)
    onehot = (dom == iota).astype(jnp.float32)       # (TN, K)

    # Select this node's own domain's feature columns (K is small & static);
    # 'layer' nodes keep zeros.
    feats = jnp.zeros((tn, d_out), jnp.float32)
    for d in range(num_types):
        feats = jnp.where(dom == d, y[:, d * d_out:(d + 1) * d_out], feats)

    # Per-domain bias folded in via a tiny matmul on the one-hot
    # (replaces the second K-pass VPU select loop).
    feats = feats + jnp.dot(onehot, b_ref[...], preferred_element_type=jnp.float32)

    # Direct sliced stores into the lane-dense output block (no wide concat
    # temp); zero the lane padding once.
    out_ref[:, :d_out] = feats.astype(out_dtype)
    out_ref[:, d_out:d_out + num_types] = onehot.astype(out_dtype)
    pad = out_lanes - (d_out + num_types)
    if pad > 0:
        out_ref[:, d_out + num_types:] = jnp.zeros((tn, pad), out_dtype)


def multi_extraction_connector(x, domain_ids, weights, biases, *,
                               tile_n=512, out_dtype=jnp.bfloat16, crop=True):
    """JAX wrapper reproducing MultiExtractionConnector.forward.

    x          : (N, D_in)  float32 per-node input features
    domain_ids : (N,)       int32   domain index in [0, K) or K for 'layer'/None
    weights    : (K, D_in, D_out)
    biases     : (K, D_out)
    returns    : (N, 1, D_out + K)           if crop=True
                 (N, round_up(D_out+K, 128)) if crop=False (no extra HBM pass;
                 consumer reads the first D_out+K lanes)
    """
    n, d_in = x.shape
    k, _, d_out = weights.shape

    # Node tile: as large as useful (kernel is mem/overhead-bound), clamped to
    # the problem size. Ragged last tiles are masked by Pallas, not padded.
    tile_n = max(8, min(int(tile_n), _round_up(n, 8)))
    # v7x has 2 TensorCores sharing the grid: keep >= 2 grid steps when there
    # is enough work so the (parallel) node axis can be split across cores.
    if n >= 256 and pl.cdiv(n, tile_n) < 2:
        tile_n = _round_up(-(-n // 2), 8)
    grid = (pl.cdiv(n, tile_n),)

    # Domain ids as an (N, 1) i32 column (tiny; low-priority narrow DMA).
    dom = domain_ids.astype(jnp.int32).reshape(n, 1)

    # Flatten weights once for a single wide matmul:
    #   W_flat[:, d*D_out:(d+1)*D_out] == W_d   (parameter-side transform, tiny)
    w_flat = jnp.transpose(weights, (1, 0, 2)).reshape(d_in, k * d_out)
    w_flat = w_flat.astype(jnp.bfloat16)
    b_f32 = biases.astype(jnp.float32)               # (K, D_out)

    out_lanes = _round_up(d_out + k, 128)
    out_bytes = jnp.dtype(out_dtype).itemsize

    # VMEM budget: double-buffered node/out tiles + weights + in-kernel y temp
    # / spill headroom. Cap is generation-aware (v7x has only 64 MiB per core).
    vmem_bytes = int(
        2 * tile_n * d_in * 4                 # x tiles (f32, double-buffered)
        + 2 * tile_n * 4                      # dom tiles
        + 2 * d_in * k * d_out * 2            # weights (allow double-buffering)
        + 2 * k * d_out * 4                   # biases
        + 2 * tile_n * out_lanes * out_bytes  # output tiles (double-buffered)
        + 3 * tile_n * k * d_out * 4)         # wide y temp + spill headroom
    try:
        vmem_cap = int(0.7 * pltpu.get_tpu_info().vmem_capacity_bytes)
    except Exception:  # conservative fallback that also fits v7x (64 MiB/TC)
        vmem_cap = 44 << 20
    vmem_limit = int(min(max(2 * vmem_bytes, 16 << 20), vmem_cap))

    out = pl.pallas_call(
        _connector_kernel,
        out_shape=jax.ShapeDtypeStruct((n, out_lanes), out_dtype),
        grid_spec=pltpu.PrefetchScalarGridSpec(
            num_scalar_prefetch=0,
            grid=grid,
            in_specs=[
                pl.BlockSpec((tile_n, d_in), lambda i: (i, 0)),
                pl.BlockSpec((tile_n, 1), lambda i: (i, 0)),
                pl.BlockSpec((d_in, k * d_out), lambda i: (0, 0)),
                pl.BlockSpec((k, d_out), lambda i: (0, 0)),
            ],
            out_specs=pl.BlockSpec((tile_n, out_lanes), lambda i: (i, 0)),
        ),
        compiler_params=pltpu.CompilerParams(
            dimension_semantics=("parallel",),
            vmem_limit_bytes=vmem_limit),
    )(x, dom, w_flat, b_f32)

    if not crop:
        return out
    # Lane crop + unsqueeze(1). Under jit this slice fuses into the consumer;
    # pass crop=False to skip the extra HBM pass entirely.
    return out[:, :d_out + k][:, None, :]


def _reference(x, domain_ids, weights, biases):
    """Plain-JAX reference of the same semantics (bf16-rounded matmul operands)."""
    k, _, d_out = weights.shape
    xq = x.astype(jnp.bfloat16).astype(jnp.float32)
    wq = weights.astype(jnp.bfloat16).astype(jnp.float32)
    all_feats = jnp.einsum("nd,kde->nke", xq, wq) + biases[None].astype(jnp.float32)
    onehot = jax.nn.one_hot(domain_ids, k, dtype=jnp.float32)  # zeros if id == K
    feats = jnp.einsum("nke,nk->ne", all_feats, onehot)        # select / zero
    out = jnp.concatenate([feats, onehot], axis=-1)
    return out[:, None, :]


if __name__ == "__main__":
    key = jax.random.PRNGKey(0)
    k_x, k_w, k_b = jax.random.split(key, 3)

    N = 8            # number of batch-tree nodes
    D_IN = 32        # per-node input feature dim (synthetic)
    OUTPUT_DIM = 32  # output_dim of the connector
    NUM_TYPES = 3    # len(feature_extraction_networks)

    x = jax.random.normal(k_x, (N, D_IN), dtype=jnp.float32)
    # Deterministic per-domain extractor parameters (synthetic, not a checkpoint).
    weights = 0.1 * jax.random.normal(k_w, (NUM_TYPES, D_IN, OUTPUT_DIM),
                                      dtype=jnp.float32)
    biases = 0.1 * jax.random.normal(k_b, (NUM_TYPES, OUTPUT_DIM),
                                     dtype=jnp.float32)
    # Domain id per node; value NUM_TYPES (=3) marks a 'layer'/None node.
    domain_ids = jnp.array([0, 1, 2, 3, 0, 1, 3, 2], dtype=jnp.int32)

    out = multi_extraction_connector(x, domain_ids, weights, biases)
    out = jax.block_until_ready(out)

    ref = _reference(x, domain_ids, weights, biases)
    assert out.shape == (N, 1, OUTPUT_DIM + NUM_TYPES), out.shape
    np.testing.assert_allclose(np.asarray(out.astype(jnp.float32)),
                               np.asarray(ref),
                               rtol=2e-2, atol=2e-2)  # bf16 output rounding
    print("KERNEL_OK")
</pallas_src>

<mosaic_0001>
module attributes {stable_mosaic.version = 11 : i64} {
  func.func @_connector_kernel(%arg0: i32, %arg1: memref<8x32xf32, #tpu.memory_space<vmem>>, %arg2: memref<8x1xi32, #tpu.memory_space<vmem>>, %arg3: memref<32x96xbf16, #tpu.memory_space<vmem>>, %arg4: memref<3x32xf32, #tpu.memory_space<vmem>>, %arg5: memref<8x128xbf16, #tpu.memory_space<vmem>>) attributes {dimension_semantics = [#tpu.dimension_semantics<parallel>], iteration_bounds = array<i64: 1>, scalar_prefetch = 0 : i64, scratch_operands = 0 : i64, tpu.core_type = #tpu.core_type<tc>, window_params = [{transform_indices = @transform_0, window_bounds = array<i64: 8, 32>}, {transform_indices = @transform_1, window_bounds = array<i64: 8, 1>}, {pipeline_mode = #tpu.pipeline_mode<synchronous>, transform_indices = @transform_2, window_bounds = array<i64: 32, 96>}, {pipeline_mode = #tpu.pipeline_mode<synchronous>, transform_indices = @transform_3, window_bounds = array<i64: 3, 32>}, {transform_indices = @transform_4, window_bounds = array<i64: 8, 128>}]} {
    %c0 = arith.constant 0 : index
    %c0_0 = arith.constant 0 : index
    %0 = vector.load %arg1[%c0, %c0_0] : memref<8x32xf32, #tpu.memory_space<vmem>>, vector<8x32xf32>
    %1 = arith.truncf %0 : vector<8x32xf32> to vector<8x32xbf16>
    %c0_1 = arith.constant 0 : index
    %c0_2 = arith.constant 0 : index
    %2 = vector.load %arg2[%c0_1, %c0_2] : memref<8x1xi32, #tpu.memory_space<vmem>>, vector<8x1xi32>
    %c0_3 = arith.constant 0 : index
    %c0_4 = arith.constant 0 : index
    %3 = vector.load %arg3[%c0_3, %c0_4] : memref<32x96xbf16, #tpu.memory_space<vmem>>, vector<32x96xbf16>
    %cst = arith.constant dense<0.000000e+00> : vector<8x96xf32>
    %4 = tpu.matmul %1, %3, %cst {dimension_numbers = #tpu.dot_dimension_numbers<[1], [0], [0], [1], [0, 0, 1, 1], [], []>} : vector<8x32xbf16>, vector<32x96xbf16>, vector<8x96xf32> -> vector<8x96xf32>
    %5 = tpu.iota {dimensions = array<i32: 1>} : vector<8x3xi32>
    %6 = vector.broadcast %2 : vector<8x1xi32> to vector<8x3xi32>
    %7 = arith.cmpi eq, %6, %5 : vector<8x3xi32>
    %8 = arith.extui %7 : vector<8x3xi1> to vector<8x3xi32>
    %9 = arith.sitofp %8 : vector<8x3xi32> to vector<8x3xf32>
    %cst_5 = arith.constant 0.000000e+00 : f32
    %10 = vector.broadcast %cst_5 : f32 to vector<8x32xf32>
    %c0_i32 = arith.constant 0 : i32
    %11 = vector.broadcast %c0_i32 : i32 to vector<8x1xi32>
    %12 = arith.cmpi eq, %2, %11 : vector<8x1xi32>
    %13 = vector.extract_strided_slice %4 {offsets = [0, 0], sizes = [8, 32], strides = [1, 1]} : vector<8x96xf32> to vector<8x32xf32>
    %14 = vector.shape_cast %12 : vector<8x1xi1> to vector<8x1xi1>
    %15 = vector.broadcast %14 : vector<8x1xi1> to vector<8x32xi1>
    %16 = arith.select %15, %13, %10 : vector<8x32xi1>, vector<8x32xf32>
    %c1_i32 = arith.constant 1 : i32
    %17 = vector.broadcast %c1_i32 : i32 to vector<8x1xi32>
    %18 = arith.cmpi eq, %2, %17 : vector<8x1xi32>
    %19 = vector.extract_strided_slice %4 {offsets = [0, 32], sizes = [8, 32], strides = [1, 1]} : vector<8x96xf32> to vector<8x32xf32>
    %20 = vector.shape_cast %18 : vector<8x1xi1> to vector<8x1xi1>
    %21 = vector.broadcast %20 : vector<8x1xi1> to vector<8x32xi1>
    %22 = arith.select %21, %19, %16 : vector<8x32xi1>, vector<8x32xf32>
    %c2_i32 = arith.constant 2 : i32
    %23 = vector.broadcast %c2_i32 : i32 to vector<8x1xi32>
    %24 = arith.cmpi eq, %2, %23 : vector<8x1xi32>
    %25 = vector.extract_strided_slice %4 {offsets = [0, 64], sizes = [8, 32], strides = [1, 1]} : vector<8x96xf32> to vector<8x32xf32>
    %26 = vector.shape_cast %24 : vector<8x1xi1> to vector<8x1xi1>
    %27 = vector.broadcast %26 : vector<8x1xi1> to vector<8x32xi1>
    %28 = arith.select %27, %25, %22 : vector<8x32xi1>, vector<8x32xf32>
    %c0_6 = arith.constant 0 : index
    %c0_7 = arith.constant 0 : index
    %29 = vector.load %arg4[%c0_6, %c0_7] : memref<3x32xf32, #tpu.memory_space<vmem>>, vector<3x32xf32>
    %cst_8 = arith.constant dense<0.000000e+00> : vector<8x32xf32>
    %30 = tpu.matmul %9, %29, %cst_8 {dimension_numbers = #tpu.dot_dimension_numbers<[1], [0], [0], [1], [0, 0, 1, 1], [], []>} : vector<8x3xf32>, vector<3x32xf32>, vector<8x32xf32> -> vector<8x32xf32>
    %31 = arith.addf %28, %30 : vector<8x32xf32>
    %32 = arith.truncf %31 : vector<8x32xf32> to vector<8x32xbf16>
    %c0_9 = arith.constant 0 : index
    %c0_10 = arith.constant 0 : index
    %33 = vector.load %arg5[%c0_9, %c0_10] : memref<8x128xbf16, #tpu.memory_space<vmem>>, vector<8x32xbf16>
    tpu.vector_store %arg5[%c0_9, %c0_10], %32 {strides = array<i32>} : memref<8x128xbf16, #tpu.memory_space<vmem>>, vector<8x32xbf16>,
    %34 = arith.truncf %9 : vector<8x3xf32> to vector<8x3xbf16>
    %c0_11 = arith.constant 0 : index
    %c32 = arith.constant 32 : index
    %35 = vector.load %arg5[%c0_11, %c32] : memref<8x128xbf16, #tpu.memory_space<vmem>>, vector<8x3xbf16>
    tpu.vector_store %arg5[%c0_11, %c32], %34 {strides = array<i32>} : memref<8x128xbf16, #tpu.memory_space<vmem>>, vector<8x3xbf16>,
    %cst_12 = arith.constant 0.000000e+00 : bf16
    %36 = vector.broadcast %cst_12 : bf16 to vector<8x93xbf16>
    %c0_13 = arith.constant 0 : index
    %c35 = arith.constant 35 : index
    %37 = vector.load %arg5[%c0_13, %c35] : memref<8x128xbf16, #tpu.memory_space<vmem>>, vector<8x93xbf16>
    tpu.vector_store %arg5[%c0_13, %c35], %36 {strides = array<i32>} : memref<8x128xbf16, #tpu.memory_space<vmem>>, vector<8x93xbf16>,
    return
  }
  func.func @transform_0(%arg0: i32) -> (i32, i32) {
    %c0_i32 = arith.constant 0 : i32
    %c0_i32_0 = arith.constant 0 : i32
    return %arg0, %c0_i32 : i32, i32
  }
  func.func @transform_1(%arg0: i32) -> (i32, i32) {
    %c0_i32 = arith.constant 0 : i32
    %c0_i32_0 = arith.constant 0 : i32
    return %arg0, %c0_i32 : i32, i32
  }
  func.func @transform_2(%arg0: i32) -> (i32, i32) {
    %c0_i32 = arith.constant 0 : i32
    %c0_i32_0 = arith.constant 0 : i32
    %c0_i32_1 = arith.constant 0 : i32
    return %c0_i32, %c0_i32_0 : i32, i32
  }
  func.func @transform_3(%arg0: i32) -> (i32, i32) {
    %c0_i32 = arith.constant 0 : i32
    %c0_i32_0 = arith.constant 0 : i32
    %c0_i32_1 = arith.constant 0 : i32
    return %c0_i32, %c0_i32_0 : i32, i32
  }
  func.func @transform_4(%arg0: i32) -> (i32, i32) {
    %c0_i32 = arith.constant 0 : i32
    %c0_i32_0 = arith.constant 0 : i32
    return %arg0, %c0_i32 : i32, i32
  }
}

</mosaic_0001>

<llo_original>
// kernel: tpu_custom_call.1
$region0: #{tpu_custom_call.1}
  #allocation0 [shape = 'u32[]', space=smem, size = 0x4, offset = 0x4, fixed_abs, tag = 'smem constant byte address 0x4 - core index']
  #allocation1 [shape = 'u32[72,128]{1,0:T(1,128)}', space=vmem, size = 0x9000, scoped, tag = 'internal scratch']
  %s0 = inlined_call_operand.vmem [shape: f32[8,32], index: 0, kind: input, shape index: {}]
  %s1 = inlined_call_operand.vmem [shape: s32[8,1], index: 1, kind: input, shape index: {}]
  %s2 = inlined_call_operand.hbm [shape: bf16[32,96], index: 2, kind: input, shape index: {}]
  %s3 = inlined_call_operand.hbm [shape: f32[3,32], index: 3, kind: input, shape index: {}]
  %s4 = inlined_call_operand.hbm [shape: bf16[8,128], index: 4, kind: output, shape index: {}]
  %s5 = sld [smem:[#allocation0]]
  $region34: #{tpu_custom_call.1} parent=0
    _
  %s7 = ssub.s32 1, %s5
  %s8 = scalar_select 0, %s7, %s5
  $region1: #{tpu_custom_call.1} parent=0
    #allocation2 [shape = 'u8[8192]{0}', space=vmem, size = 0x2000, scoped, tag = 'input window, operand 2, single buffered']
    #allocation3 [shape = 's32[1]{0}', space=sflag, size = 0x4, scoped, tag = 'scoped memory for tpu_custom_call.1']
    #allocation4 [shape = 's32[1]{0}', space=sflag, size = 0x4, scoped, tag = 'scoped memory for tpu_custom_call.1']
    #allocation5 [shape = 'u8[2048]{0}', space=vmem, size = 0x800, scoped, tag = 'input window, operand 3, single buffered']
    #allocation6 [shape = 's32[1]{0}', space=sflag, size = 0x4, scoped, tag = 'scoped memory for tpu_custom_call.1']
    #allocation7 [shape = 'u8[2048]{0}', space=vmem, size = 0x800, scoped, tag = 'output window, operand 0, single buffered']
    %9 = vsyncpa [#allocation3], 0
    %10 = vsyncpa [#allocation6], 0
    %11 = vsyncpa [#allocation4], 0
    // Predicated region
    $region2: #{tpu_custom_call.1} parent=1 // pred_check
      _
    $region3: #{tpu_custom_call.1} parent=1 // pred_check_branch
      %13 = sbr.rel (0) target = $region5
    $region4: #{tpu_custom_call.1} parent=1 // pred_region
      _
    $region5: #{tpu_custom_call.1} parent=1 // pred_fallthru
      _
    // Predicated region
    $region6: #{tpu_custom_call.1} parent=1 // pred_check
      _
    $region7: #{tpu_custom_call.1} parent=1 // pred_check_branch
      %15 = sbr.rel (0) target = $region9
    $region8: #{tpu_custom_call.1} parent=1 // pred_region
      _
    $region9: #{tpu_custom_call.1} parent=1 // pred_fallthru
      _
    // Predicated region
    $region10: #{tpu_custom_call.1} parent=1 // pred_check
      _
    $region11: #{tpu_custom_call.1} parent=1 // pred_check_branch
      %17 = sbr.rel (0) target = $region13
    $region12: #{tpu_custom_call.1} parent=1 // pred_region
      %19 = vsyncadd [#allocation3], 0
      %s20 = sshll.u32 %s2, 4
      %s21 = int_to_ptr.hbm [resolvable:$true] %s20
      %s22 = sshll.u32 [#allocation2], 4
      %s23 = int_to_ptr.vmem [resolvable:$true] %s22
      %28 = dma.hbm_to_vmem [thread:$0]  %s21, 256, %s23, [#allocation3], 64, 64, 4
    $region13: #{tpu_custom_call.1} parent=1 // pred_fallthru
      _
    // Predicated region
    $region14: #{tpu_custom_call.1} parent=1 // pred_check
      _
    $region15: #{tpu_custom_call.1} parent=1 // pred_check_branch
      %30 = sbr.rel (0) target = $region17
    $region16: #{tpu_custom_call.1} parent=1 // pred_region
      %32 = vsyncadd [#allocation6], 0
      %s34 = sshll.u32 %s3, 4
      %s35 = int_to_ptr.hbm [resolvable:$true] %s34
      %s36 = sshll.u32 [#allocation5], 4
      %s37 = int_to_ptr.vmem [resolvable:$true] %s36
      %39 = dma.hbm_to_vmem [thread:$0]  %s35, 64, %s37, [#allocation6]
    $region17: #{tpu_custom_call.1} parent=1 // pred_fallthru
      _
    // Predicated region
    $region18: #{tpu_custom_call.1} parent=1 // pred_check
      _
    $region19: #{tpu_custom_call.1} parent=1 // pred_check_branch
      %41 = sbr.rel (0) target = $region21
    $region20: #{tpu_custom_call.1} parent=1 // pred_region
      %43 = dma.done [#allocation3], 256
    $region21: #{tpu_custom_call.1} parent=1 // pred_fallthru
      _
    // Predicated region
    $region22: #{tpu_custom_call.1} parent=1 // pred_check
      _
    $region23: #{tpu_custom_call.1} parent=1 // pred_check_branch
      %45 = sbr.rel (0) target = $region25
    $region24: #{tpu_custom_call.1} parent=1 // pred_region
      %47 = dma.done [#allocation6], 64
    $region25: #{tpu_custom_call.1} parent=1 // pred_fallthru
      _
    %v49 = vld [vmem:[%s0] sm:$0xff]
    %v50 = vpack.c.bf16 %v49, %v49
    %v51 = vld [vmem:[%s1] sm:$0xff]
    %v52 = vld [vmem:[#allocation2] sm:$0xf]
    %v53 = vld [vmem:[#allocation2 + $0x4] sm:$0xf]
    %v54 = vld [vmem:[#allocation2 + $0x8] sm:$0xf]
    %v55 = vld [vmem:[#allocation2 + $0xc] sm:$0xf]
    %v60 = vunpack.c.l.b16 %v52
    %v61 = vunpack.c.l.b16 %v53
    %v62 = vunpack.c.l.b16 %v54
    %v63 = vunpack.c.l.b16 %v55
    %v64 = vpack.c.b16 %v61, %v60
    %v65 = vpack.c.b16 %v63, %v62
    %vm68 = vcmask 261120
    %v70 = vsel %vm68, %v50, 0
    %72 = vmatpush.bf16.msra.mxu0 0
    %73 = vmatpush.bf16.msra.mxu0 0
    %74 = vmatpush.bf16.msra.mxu0 0
    %75 = vmatpush.bf16.msra.mxu0 0
    %76 = vmatpush.bf16.msra.mxu0 0
    %77 = vmatpush.bf16.msra.mxu0 0
    %78 = vmatpush.bf16.msra.mxu0 %v65
    %79 = vmatpush.bf16.msra.mxu0 %v64
    %80 = vmatmul.bf16.gmra.mxu0 %v70
    %v81 = vpop.f32.mrf.mxu0
    %v82 = vadd.f32 0.0, %v81
    %v83 = vpop.f32.mrf.mxu0
    %84 = vdwg.mxu0
    %v85 = vlaneseq
    %v86 = vand.u32 %v85, 127
    %87 = vset.pattern.permute.xlu0 0
    %88 = vperm.xlu0 %87, %v51
    %v89 = vpop.permute.xlu0 %88
    %vm90 = vcmp.eq.s32.totalorder %v89, %v86
    %v91 = vsel %vm90, 1, 0
    %v92 = vcvt.s32.f32 %v91
    %vm93 = vcmp.eq.s32.totalorder %v51, 0
    %v94 = vsel %vm93, 1, 0
    %95 = vset.pattern.permute.xlu0 0
    %96 = vperm.xlu0 %95, %v94
    %v97 = vpop.permute.xlu0 %96
    %vm98 = vcmp.eq.s32.totalorder %v97, 1
    %v99 = vsel %vm98, %v82, 0.0
    %vm100 = vcmp.eq.s32.totalorder %v51, 1
    %v101 = vsel %vm100, 1, 0
    %102 = vset.pattern.permute.xlu0 0
    %103 = vperm.xlu0 %102, %v101
    %v104 = vpop.permute.xlu0 %103
    %vm105 = vcmp.eq.s32.totalorder %v104, 1
    %107 = vrot.lane.b32.xlu0 %v99, 32
    %v108 = vpop.permute.xlu0 %107
    %v110 = vsel %vm105, %v82, %v108
    %vm111 = vcmp.eq.s32.totalorder %v51, 2
    %v112 = vsel %vm111, 1, 0
    %113 = vset.pattern.permute.xlu0 0
    %114 = vperm.xlu0 %113, %v112
    %v115 = vpop.permute.xlu0 %114
    %vm116 = vcmp.eq.s32.totalorder %v115, 1
    %118 = vrot.lane.b32.xlu0 %v110, 32
    %v119 = vpop.permute.xlu0 %118
    %v121 = vsel %vm116, %v82, %v119
    %v122 = vld [vmem:[#allocation5] sm:$0x7]
    %vm123 = vcmask 23552
    %v125 = vsel %vm123, %v92, 0
    %vm127 = vcmask 1042432
    %v129 = vsel %vm127, %v122, 0
    %131 = vmatpush.msra.mxu0 0.0
    %132 = vmatpush.msra.mxu0 0.0
    %133 = vmatpush.msra.mxu0 0.0
    %134 = vmatpush.msra.mxu0 0.0
    %135 = vmatpush.msra.mxu0 0.0
    %136 = vmatpush.msra.mxu0 0.0
    %137 = vmatpush.msra.mxu0 0.0
    %138 = vmatpush.msra.mxu0 0.0
    %139 = vmatpush.msra.mxu0 0.0
    %140 = vmatpush.msra.mxu0 0.0
    %141 = vmatpush.msra.mxu0 0.0
    %142 = vmatpush.msra.mxu0 0.0
    %143 = vmatpush.msra.mxu0 0.0
    %144 = vmatpush.msra.mxu0 0.0
    %145 = vmatpush.msra.mxu0 0.0
    %146 = vmatpush.msra.mxu0 %v129
    %147 = vmatmul.f32.gmra.mxu0 %v125
    %v148 = vpop.f32.mrf.mxu0
    %v149 = vadd.f32 0.0, %v148
    %150 = vdwg.mxu0
    %152 = vrot.lane.b32.xlu0 %v149, 64
    %v153 = vpop.permute.xlu0 %152
    %v155 = vadd.f32 %v121, %v153
    %v156 = vpack.c.bf16 %v155, %v155
    %158 = vrot.lane.b32.xlu0 %v156, 64
    %v159 = vpop.permute.xlu0 %158
    %vm161 = vcmask 257024
    %162 = vst.msk [vmem:[#allocation7] sm:$0xf] %vm161, %v159
    %v163 = vpack.c.bf16 %v92, %v92
    %165 = vrot.lane.b32.xlu0 %v163, 32
    %v166 = vpop.permute.xlu0 %165
    %vm168 = vcmask 281856
    %169 = vst.msk [vmem:[#allocation7] sm:$0xf] %vm168, %v166
    %vm170 = vcmask 1043736
    %171 = vst.msk [vmem:[#allocation7] sm:$0xf] %vm170, 0
    // Predicated region
    $region26: #{tpu_custom_call.1} parent=1 // pred_check
      _
    $region27: #{tpu_custom_call.1} parent=1 // pred_check_branch
      %173 = sbr.rel (0) target = $region29
    $region28: #{tpu_custom_call.1} parent=1 // pred_region
      %175 = vsyncadd [#allocation4], 0
      %s177 = sshll.u32 [#allocation7], 4
      %s178 = int_to_ptr.vmem [resolvable:$true] %s177
      %s179 = sshll.u32 %s4, 4
      %s180 = int_to_ptr.hbm [resolvable:$true] %s179
      %182 = dma.vmem_to_hbm [thread:$0]  %s178, 64, %s180, [#allocation4]
    $region29: #{tpu_custom_call.1} parent=1 // pred_fallthru
      _
    // Predicated region
    $region30: #{tpu_custom_call.1} parent=1 // pred_check
      _
    $region31: #{tpu_custom_call.1} parent=1 // pred_check_branch
      %184 = sbr.rel (0) target = $region33
    $region32: #{tpu_custom_call.1} parent=1 // pred_region
      %186 = dma.done [#allocation4], 64
    $region33: #{tpu_custom_call.1} parent=1 // pred_fallthru
      _
    %187 = vsyncpa [#allocation3], 1
    %188 = vsyncpa [#allocation6], 1
    %189 = vsyncpa [#allocation4], 1

</llo_original>
